<compile_context>
chip_gen: v5e
topology: v5e:2x2
jax: 0.10.0
libtpu: 0.0.40
codegen_flags: <defaults>
</compile_context>

<pallas_src>
import jax
import jax.numpy as jnp
import numpy as np
from jax.experimental import pallas as pl
from jax.experimental.pallas import tpu as pltpu


# ----------------------------------------------------------------------------
# Static (buffer) constants — identical to GridEncoder.__init__ defaults.
# ----------------------------------------------------------------------------
GRID_SIZE = 5
MIN_VAL = (-0.65, -0.9)
MAX_VAL = (0.9, 0.35)
SIGMA_SCALE = 0.8

GRID_SPACING_X = (MAX_VAL[0] - MIN_VAL[0]) / (GRID_SIZE - 1)
GRID_SPACING_Y = (MAX_VAL[1] - MIN_VAL[1]) / (GRID_SIZE - 1)
SIGMA_X = SIGMA_SCALE * GRID_SPACING_X
SIGMA_Y = SIGMA_SCALE * GRID_SPACING_Y
INV_2SX2 = float(1.0 / (2.0 * SIGMA_X * SIGMA_X))
INV_2SY2 = float(1.0 / (2.0 * SIGMA_Y * SIGMA_Y))

N_CENTERS = GRID_SIZE * GRID_SIZE          # 25
N_MUSCLE = 12
IN_DIM = 15
OUT_DIM = N_MUSCLE + N_CENTERS + 1         # 38

# Large, mem-bound-friendly tile (multiple of 8).  Lane-padded VMEM cost:
#   2 inputs-buffers + 2 output-buffers = 4 * 4096 * 128 * 4 B = 8 MiB.
DEFAULT_BATCH_TILE = 4096


def _build_centers():
    """[2, 38] f32: row0 = cx, row1 = cy; lanes 12..36 hold the flattened
    meshgrid(indexing='ij') centers (same order as the PyTorch buffer)."""
    xs = np.linspace(MIN_VAL[0], MAX_VAL[0], GRID_SIZE).astype(np.float32)
    ys = np.linspace(MIN_VAL[1], MAX_VAL[1], GRID_SIZE).astype(np.float32)
    Xg, Yg = np.meshgrid(xs, ys, indexing="ij")
    c = np.zeros((2, OUT_DIM), np.float32)
    c[0, N_MUSCLE:N_MUSCLE + N_CENTERS] = Xg.reshape(-1)
    c[1, N_MUSCLE:N_MUSCLE + N_CENTERS] = Yg.reshape(-1)
    return c


CENTERS_CONST = _build_centers()


def _round_up(n, m):
    return ((n + m - 1) // m) * m


# ----------------------------------------------------------------------------
# Pallas kernel
# ----------------------------------------------------------------------------
def _encoder_kernel(c_ref, x_ref, o_ref):
    # c_ref : [2, 38]    x_ref : [TILE, 15]    o_ref : [TILE, 38]
    x = x_ref[...].astype(jnp.float32)       # in-kernel cast (no-op for f32 input)
    tb = x.shape[0]

    tx = x[:, 12:13]                         # [TB, 1] target x
    ty = x[:, 13:14]                         # [TB, 1] target y
    tz = x[:, 14:15]                         # [TB, 1] target z (passthrough)

    cx = c_ref[0:1, :]                       # [1, 38] centers live in lanes 12..36
    cy = c_ref[1:2, :]                       # [1, 38]

    # NOTE: rows of a partial last block contain padding; exp() on them stays
    # finite (cx/cy are 0 outside lanes 12..36) and the OOB rows are
    # write-masked by Pallas.  Do not add block-wide reductions here.
    dx = tx - cx                             # [TB, 38] (lane broadcast)
    dy = ty - cy                             # [TB, 38]
    act = jnp.exp(-(dx * dx) * INV_2SX2 - (dy * dy) * INV_2SY2)   # EUP, lanes 12..36 valid

    # Merge [muscle | act | z] into one 38-wide value -> single store per group.
    lane = jax.lax.broadcasted_iota(jnp.int32, (1, OUT_DIM), 1)   # [1, 38]
    x_pad = jnp.concatenate(
        [x, jnp.zeros((tb, OUT_DIM - IN_DIM), jnp.float32)], axis=1)  # [TB, 38]

    out = jnp.where(lane < N_MUSCLE, x_pad,
                    jnp.where(lane < N_MUSCLE + N_CENTERS, act, tz))
    o_ref[...] = out.astype(o_ref.dtype)


# ----------------------------------------------------------------------------
# Wrapper
# ----------------------------------------------------------------------------
def modality_specific_encoder(x, batch_tile=DEFAULT_BATCH_TILE):
    """x: [B, 15] -> [B, 38] float32."""
    assert x.ndim == 2 and x.shape[1] == IN_DIM
    B = x.shape[0]

    # Clamp tile to the (8-rounded) batch; keep it a multiple of 8.
    tile = min(batch_tile, _round_up(max(B, 1), 8))
    # v7x has 2 TensorCores per chip: make sure moderate batches yield >= 2
    # grid steps so the single "parallel" axis shards across both cores.
    if B >= 64 and pl.cdiv(B, tile) < 2:
        tile = max(8, _round_up(pl.cdiv(B, 2), 8))
    grid = (pl.cdiv(B, tile),)               # partial last block handled by Pallas

    centers = jnp.asarray(CENTERS_CONST)     # tiny [2, 38] constant input

    return pl.pallas_call(
        _encoder_kernel,
        out_shape=jax.ShapeDtypeStruct((B, OUT_DIM), jnp.float32),
        grid_spec=pltpu.PrefetchScalarGridSpec(
            num_scalar_prefetch=0,
            grid=grid,
            in_specs=[
                pl.BlockSpec((2, OUT_DIM), lambda i: (0, 0)),      # grid centers
                pl.BlockSpec((tile, IN_DIM), lambda i: (i, 0)),    # input rows
            ],
            out_specs=pl.BlockSpec((tile, OUT_DIM), lambda i: (i, 0)),
        ),
        compiler_params=pltpu.CompilerParams(
            dimension_semantics=("parallel",)),
    )(centers, x)


# ----------------------------------------------------------------------------
# Pure-numpy reference (mirrors the PyTorch forward) for a sanity check
# ----------------------------------------------------------------------------
def _reference(x):
    x = np.asarray(x, dtype=np.float32)
    xs = np.linspace(MIN_VAL[0], MAX_VAL[0], GRID_SIZE).astype(np.float32)
    ys = np.linspace(MIN_VAL[1], MAX_VAL[1], GRID_SIZE).astype(np.float32)
    Xg, Yg = np.meshgrid(xs, ys, indexing="ij")
    cx = Xg.reshape(1, -1).astype(np.float32)
    cy = Yg.reshape(1, -1).astype(np.float32)

    muscle = x[:, :N_MUSCLE]
    tx = x[:, 12:13]
    ty = x[:, 13:14]
    tz = x[:, 14:15]
    dx = tx - cx
    dy = ty - cy
    act = np.exp(-(dx ** 2) * INV_2SX2 - (dy ** 2) * INV_2SY2)
    return np.concatenate([muscle, act, tz], axis=1)


if __name__ == "__main__":
    key = jax.random.PRNGKey(0)

    # Case 1: small batch (single partial block).
    B1 = 2
    x1 = jax.random.normal(key, (B1, IN_DIM), dtype=jnp.float32)
    out1 = jax.block_until_ready(modality_specific_encoder(x1))
    assert out1.shape == (B1, OUT_DIM), out1.shape
    np.testing.assert_allclose(np.asarray(out1), _reference(x1),
                               rtol=1e-5, atol=1e-5)

    # Case 2: multi-tile grid with a partial last block (explicit small tile).
    B2 = 1000
    x2 = jax.random.normal(jax.random.PRNGKey(1), (B2, IN_DIM), dtype=jnp.float32)
    out2 = jax.block_until_ready(modality_specific_encoder(x2, batch_tile=256))
    assert out2.shape == (B2, OUT_DIM), out2.shape
    np.testing.assert_allclose(np.asarray(out2), _reference(x2),
                               rtol=1e-5, atol=1e-5)

    # Case 3: default tile -> exercises the >=2-step (megacore) split path.
    out3 = jax.block_until_ready(modality_specific_encoder(x2))
    np.testing.assert_allclose(np.asarray(out3), _reference(x2),
                               rtol=1e-5, atol=1e-5)

    print("KERNEL_OK")
</pallas_src>

<mosaic_0001>
module attributes {stable_mosaic.version = 11 : i64} {
  func.func @_encoder_kernel(%arg0: i32, %arg1: memref<2x38xf32, #tpu.memory_space<vmem>>, %arg2: memref<8x15xf32, #tpu.memory_space<vmem>>, %arg3: memref<8x38xf32, #tpu.memory_space<vmem>>) attributes {dimension_semantics = [#tpu.dimension_semantics<parallel>], iteration_bounds = array<i64: 1>, scalar_prefetch = 0 : i64, scratch_operands = 0 : i64, tpu.core_type = #tpu.core_type<tc>, window_params = [{pipeline_mode = #tpu.pipeline_mode<synchronous>, transform_indices = @transform_0, window_bounds = array<i64: 2, 38>}, {transform_indices = @transform_1, window_bounds = array<i64: 8, 15>}, {transform_indices = @transform_2, window_bounds = array<i64: 8, 38>}]} {
    %c0 = arith.constant 0 : index
    %c0_0 = arith.constant 0 : index
    %0 = vector.load %arg2[%c0, %c0_0] : memref<8x15xf32, #tpu.memory_space<vmem>>, vector<8x15xf32>
    %1 = vector.extract_strided_slice %0 {offsets = [0, 12], sizes = [8, 1], strides = [1, 1]} : vector<8x15xf32> to vector<8x1xf32>
    %2 = vector.extract_strided_slice %0 {offsets = [0, 13], sizes = [8, 1], strides = [1, 1]} : vector<8x15xf32> to vector<8x1xf32>
    %3 = vector.extract_strided_slice %0 {offsets = [0, 14], sizes = [8, 1], strides = [1, 1]} : vector<8x15xf32> to vector<8x1xf32>
    %c0_1 = arith.constant 0 : index
    %c0_2 = arith.constant 0 : index
    %4 = vector.load %arg1[%c0_1, %c0_2] : memref<2x38xf32, #tpu.memory_space<vmem>>, vector<1x38xf32>
    %c1 = arith.constant 1 : index
    %c0_3 = arith.constant 0 : index
    %5 = vector.load %arg1[%c1, %c0_3] : memref<2x38xf32, #tpu.memory_space<vmem>>, vector<1x38xf32>
    %6 = vector.broadcast %1 : vector<8x1xf32> to vector<8x38xf32>
    %7 = vector.broadcast %4 : vector<1x38xf32> to vector<8x38xf32>
    %8 = arith.subf %6, %7 : vector<8x38xf32>
    %9 = vector.broadcast %2 : vector<8x1xf32> to vector<8x38xf32>
    %10 = vector.broadcast %5 : vector<1x38xf32> to vector<8x38xf32>
    %11 = arith.subf %9, %10 : vector<8x38xf32>
    %12 = arith.mulf %8, %8 : vector<8x38xf32>
    %cst = arith.constant 0.000000e+00 : f32
    %13 = vector.broadcast %cst : f32 to vector<8x38xf32>
    %14 = arith.subf %13, %12 : vector<8x38xf32>
    %cst_4 = arith.constant 5.20291376 : f32
    %15 = vector.broadcast %cst_4 : f32 to vector<8x38xf32>
    %16 = arith.mulf %14, %15 : vector<8x38xf32>
    %17 = arith.mulf %11, %11 : vector<8x38xf32>
    %cst_5 = arith.constant 8.000000e+00 : f32
    %18 = vector.broadcast %cst_5 : f32 to vector<8x38xf32>
    %19 = arith.mulf %17, %18 : vector<8x38xf32>
    %20 = arith.subf %16, %19 : vector<8x38xf32>
    %21 = math.exp %20 : vector<8x38xf32>
    %22 = tpu.iota {dimensions = array<i32: 1>} : vector<1x38xi32>
    %cst_6 = arith.constant 0.000000e+00 : f32
    %23 = vector.broadcast %cst_6 : f32 to vector<8x23xf32>
    %24 = tpu.concatenate %0, %23 in 1 : vector<8x15xf32>, vector<8x23xf32> -> vector<8x38xf32>
    %c12_i32 = arith.constant 12 : i32
    %25 = vector.broadcast %c12_i32 : i32 to vector<1x38xi32>
    %26 = arith.cmpi slt, %22, %25 : vector<1x38xi32>
    %c37_i32 = arith.constant 37 : i32
    %27 = vector.broadcast %c37_i32 : i32 to vector<1x38xi32>
    %28 = arith.cmpi slt, %22, %27 : vector<1x38xi32>
    %29 = vector.shape_cast %28 : vector<1x38xi1> to vector<1x38xi1>
    %30 = vector.broadcast %29 : vector<1x38xi1> to vector<8x38xi1>
    %31 = vector.shape_cast %3 : vector<8x1xf32> to vector<8x1xf32>
    %32 = vector.broadcast %31 : vector<8x1xf32> to vector<8x38xf32>
    %33 = arith.select %30, %21, %32 : vector<8x38xi1>, vector<8x38xf32>
    %34 = vector.shape_cast %26 : vector<1x38xi1> to vector<1x38xi1>
    %35 = vector.broadcast %34 : vector<1x38xi1> to vector<8x38xi1>
    %36 = arith.select %35, %24, %33 : vector<8x38xi1>, vector<8x38xf32>
    %c0_7 = arith.constant 0 : index
    %c0_8 = arith.constant 0 : index
    %37 = vector.load %arg3[%c0_7, %c0_8] : memref<8x38xf32, #tpu.memory_space<vmem>>, vector<8x38xf32>
    tpu.vector_store %arg3[%c0_7, %c0_8], %36 {strides = array<i32>} : memref<8x38xf32, #tpu.memory_space<vmem>>, vector<8x38xf32>,
    return
  }
  func.func @transform_0(%arg0: i32) -> (i32, i32) {
    %c0_i32 = arith.constant 0 : i32
    %c0_i32_0 = arith.constant 0 : i32
    %c0_i32_1 = arith.constant 0 : i32
    return %c0_i32, %c0_i32_0 : i32, i32
  }
  func.func @transform_1(%arg0: i32) -> (i32, i32) {
    %c0_i32 = arith.constant 0 : i32
    %c0_i32_0 = arith.constant 0 : i32
    return %arg0, %c0_i32 : i32, i32
  }
  func.func @transform_2(%arg0: i32) -> (i32, i32) {
    %c0_i32 = arith.constant 0 : i32
    %c0_i32_0 = arith.constant 0 : i32
    return %arg0, %c0_i32 : i32, i32
  }
}

</mosaic_0001>

<llo_original>
// kernel: tpu_custom_call.1
$region0: #{tpu_custom_call.1}
  #allocation0 [shape = 'u32[]', space=smem, size = 0x4, offset = 0x4, fixed_abs, tag = 'smem constant byte address 0x4 - core index']
  #allocation1 [shape = 'u32[72,128]{1,0:T(1,128)}', space=vmem, size = 0x9000, scoped, tag = 'internal scratch']
  %s0 = inlined_call_operand.hbm [shape: f32[2,38], index: 0, kind: input, shape index: {}]
  %s1 = inlined_call_operand.hbm [shape: f32[2,15], index: 1, kind: input, shape index: {}]
  %s2 = inlined_call_operand.hbm [shape: f32[2,38], index: 2, kind: output, shape index: {}]
  %s3 = sld [smem:[#allocation0]]
  $region26: #{tpu_custom_call.1} parent=0
    _
  %s5 = ssub.s32 1, %s3
  %s6 = scalar_select 0, %s5, %s3
  $region1: #{tpu_custom_call.1} parent=0
    #allocation2 [shape = 'u8[1024]{0}', space=vmem, size = 0x400, scoped, tag = 'input window, operand 0, single buffered']
    #allocation3 [shape = 's32[1]{0}', space=sflag, size = 0x4, scoped, tag = 'scoped memory for tpu_custom_call.1']
    #allocation4 [shape = 's32[1]{0}', space=sflag, size = 0x4, scoped, tag = 'scoped memory for tpu_custom_call.1']
    #allocation5 [shape = 'u8[4096]{0}', space=vmem, size = 0x1000, scoped, tag = 'input window, operand 1, single buffered']
    #allocation6 [shape = 's32[1]{0}', space=sflag, size = 0x4, scoped, tag = 'scoped memory for tpu_custom_call.1']
    #allocation7 [shape = 'u8[4096]{0}', space=vmem, size = 0x1000, scoped, tag = 'output window, operand 0, single buffered']
    %7 = vsyncpa [#allocation3], 0
    %8 = vsyncpa [#allocation6], 0
    %9 = vsyncpa [#allocation4], 0
    // Predicated region
    $region2: #{tpu_custom_call.1} parent=1 // pred_check
      _
    $region3: #{tpu_custom_call.1} parent=1 // pred_check_branch
      %11 = sbr.rel (0) target = $region5
    $region4: #{tpu_custom_call.1} parent=1 // pred_region
      %13 = vsyncadd [#allocation3], 0
      %s15 = sshll.u32 %s0, 4
      %s16 = int_to_ptr.hbm [resolvable:$true] %s15
      %s17 = sshll.u32 [#allocation2], 4
      %s18 = int_to_ptr.vmem [resolvable:$true] %s17
      %20 = dma.hbm_to_vmem [thread:$0]  %s16, 32, %s18, [#allocation3]
    $region5: #{tpu_custom_call.1} parent=1 // pred_fallthru
      _
    // Predicated region
    $region6: #{tpu_custom_call.1} parent=1 // pred_check
      _
    $region7: #{tpu_custom_call.1} parent=1 // pred_check_branch
      %22 = sbr.rel (0) target = $region9
    $region8: #{tpu_custom_call.1} parent=1 // pred_region
      %24 = vsyncadd [#allocation6], 96
      %s25 = sshll.u32 %s1, 4
      %s26 = int_to_ptr.hbm [resolvable:$true] %s25
      %s27 = sshll.u32 [#allocation5], 4
      %s28 = int_to_ptr.vmem [resolvable:$true] %s27
      %33 = dma.hbm_to_vmem [thread:$0]  %s26, 32, %s28, [#allocation6], 32, 32, 2
    $region9: #{tpu_custom_call.1} parent=1 // pred_fallthru
      _
    // Predicated region
    $region10: #{tpu_custom_call.1} parent=1 // pred_check
      _
    $region11: #{tpu_custom_call.1} parent=1 // pred_check_branch
      %35 = sbr.rel (0) target = $region13
    $region12: #{tpu_custom_call.1} parent=1 // pred_region
      %37 = dma.done [#allocation3], 32
    $region13: #{tpu_custom_call.1} parent=1 // pred_fallthru
      _
    // Predicated region
    $region14: #{tpu_custom_call.1} parent=1 // pred_check
      _
    $region15: #{tpu_custom_call.1} parent=1 // pred_check_branch
      %39 = sbr.rel (0) target = $region17
    $region16: #{tpu_custom_call.1} parent=1 // pred_region
      %41 = dma.done [#allocation6], 128
    $region17: #{tpu_custom_call.1} parent=1 // pred_fallthru
      _
    %v42 = vld [vmem:[#allocation5] sm:$0xff]
    %v43 = vld [vmem:[#allocation2] sm:$0x1]
    %v44 = vld [vmem:[#allocation2 + $0x1] sm:$0x1]
    %46 = vset.pattern.permute.xlu0 12
    %47 = vperm.xlu0 %46, %v42
    %v48 = vpop.permute.xlu0 %47
    %v50 = vperm.slane %v43, 0
    %v51 = vsub.f32 %v48, %v50
    %52 = vset.pattern.permute.xlu0 13
    %53 = vperm.xlu0 %52, %v42
    %v54 = vpop.permute.xlu0 %53
    %v56 = vperm.slane %v44, 0
    %v57 = vsub.f32 %v54, %v56
    %v58 = vmul.f32 %v51, %v51
    %v59 = vsub.f32 0.0, %v58
    %v60 = vmul.f32 %v59, 5.2029138
    %v61 = vmul.f32 %v57, %v57
    %v62 = vmul.f32 %v61, 8.0
    %v63 = vsub.f32 %v60, %v62
    %v64 = vmul.f32 %v63, 1.442695
    %v65 = vpow.pop %v64
    %v66 = vlaneseq
    %v67 = vand.u32 %v66, 127
    %vm68 = vcmask 121856
    %v69 = vsel %vm68, %v42, 0.0
    %vm70 = vcmp.lt.s32.totalorder %v67, 12
    %vm71 = vcmp.lt.s32.totalorder %v67, 37
    %v72 = vsel %vm71, 1, 0
    %vm73 = vcmp.eq.s32.totalorder %v72, 1
    %74 = vset.pattern.permute.xlu0 14
    %75 = vperm.xlu0 %74, %v42
    %v76 = vpop.permute.xlu0 %75
    %v78 = vsel %vm73, %v65, %v76
    %v79 = vsel %vm70, 1, 0
    %vm80 = vcmp.eq.s32.totalorder %v79, 1
    %v81 = vsel %vm80, %v69, %v78
    %vm82 = vcmask 310272
    %83 = vst.msk [vmem:[#allocation7] sm:$0xff] %vm82, %v81
    // Predicated region
    $region18: #{tpu_custom_call.1} parent=1 // pred_check
      _
    $region19: #{tpu_custom_call.1} parent=1 // pred_check_branch
      %85 = sbr.rel (0) target = $region21
    $region20: #{tpu_custom_call.1} parent=1 // pred_region
      %87 = vsyncadd [#allocation4], 96
      %s88 = sshll.u32 [#allocation7], 4
      %s89 = int_to_ptr.vmem [resolvable:$true] %s88
      %s90 = sshll.u32 %s2, 4
      %s91 = int_to_ptr.hbm [resolvable:$true] %s90
      %96 = dma.vmem_to_hbm [thread:$0]  %s89, 32, %s91, [#allocation4], 32, 32, 2
    $region21: #{tpu_custom_call.1} parent=1 // pred_fallthru
      _
    // Predicated region
    $region22: #{tpu_custom_call.1} parent=1 // pred_check
      _
    $region23: #{tpu_custom_call.1} parent=1 // pred_check_branch
      %98 = sbr.rel (0) target = $region25
    $region24: #{tpu_custom_call.1} parent=1 // pred_region
      %100 = dma.done [#allocation4], 128
    $region25: #{tpu_custom_call.1} parent=1 // pred_fallthru
      _
    %101 = vsyncpa [#allocation3], 1
    %102 = vsyncpa [#allocation6], 1
    %103 = vsyncpa [#allocation4], 1

</llo_original>
